<compile_context>
chip_gen: v5e
topology: v5e:2x2
jax: 0.10.0
libtpu: 0.0.40
codegen_flags: <defaults>
</compile_context>

<pallas_src>
import jax
import jax.numpy as jnp
from jax.experimental import pallas as pl
from jax.experimental.pallas import tpu as pltpu


def _pi_kernel(p_ref, x_ref, o_ref):
    # p_ref: (2, C)     p_ref[k, c]    = params[c, k]
    # x_ref: (2, 2, C)  x_ref[k, j, c] = x[2c + j, k]
    # o_ref: (2, C)     o_ref[j, c]    = y[2c + j]
    gains = jnp.exp(p_ref[...])                  # (2, C), EUP transcendental
    x0 = x_ref[0, :, :]                          # (2, C) feature-0 plane
    x1 = x_ref[1, :, :]                          # (2, C) feature-1 plane
    # Lane-dense VPU multiply/add; sublane-broadcast of the (1, C) gain rows.
    o_ref[...] = gains[0:1, :] * x0 + gains[1:2, :] * x1


def multi_pi_positive(params, x):
    """params: (C, 2) f32, x: (2*C, 2) f32 -> y: (2*C,) f32."""
    c = params.shape[0]
    # Layout plumbing only: put the controller axis on lanes for the kernel.
    p_t = jnp.transpose(params, (1, 0))                        # (2, C)
    x_t = jnp.transpose(x.reshape(c, 2, 2), (2, 1, 0))         # (2, 2, C): [k, j, c]
    y_plane = pl.pallas_call(
        _pi_kernel,
        out_shape=jax.ShapeDtypeStruct((2, c), jnp.float32),
        in_specs=[
            pl.BlockSpec(memory_space=pltpu.MemorySpace.VMEM),
            pl.BlockSpec(memory_space=pltpu.MemorySpace.VMEM),
        ],
        out_specs=pl.BlockSpec(memory_space=pltpu.MemorySpace.VMEM),
    )(p_t, x_t)
    # y_plane[j, c] = y[2c + j]  ->  interleave back to the module's flat order.
    return jnp.transpose(y_plane, (1, 0)).reshape(2 * c)


def multi_pi_positive_ref(params, x):
    gains = jnp.exp(jnp.repeat(params, 2, axis=0))
    return jnp.sum(gains * x, axis=-1)


if __name__ == "__main__":
    controllers_number = 8
    key = jax.random.PRNGKey(0)
    kp, kx = jax.random.split(key)
    # The module initializes params to zeros; use small deterministic non-zero
    # values so exp() is exercised non-trivially (still fully in-script).
    params = 0.1 * jax.random.normal(kp, (controllers_number, 2), dtype=jnp.float32)
    x = jax.random.normal(kx, (2 * controllers_number, 2), dtype=jnp.float32)

    y = jax.jit(multi_pi_positive)(params, x)
    y = jax.block_until_ready(y)

    y_ref = multi_pi_positive_ref(params, x)
    assert y.shape == (2 * controllers_number,)
    assert jnp.allclose(y, y_ref, atol=1e-5, rtol=1e-5)
    print("KERNEL_OK")
</pallas_src>

<mosaic_0001>
module attributes {stable_mosaic.version = 11 : i64} {
  func.func @_pi_kernel(%arg0: memref<2x8xf32, #tpu.memory_space<vmem>>, %arg1: memref<2x2x8xf32, #tpu.memory_space<vmem>>, %arg2: memref<2x8xf32, #tpu.memory_space<vmem>>) attributes {dimension_semantics = [], scalar_prefetch = 0 : i64, scratch_operands = 0 : i64, tpu.core_type = #tpu.core_type<tc>} {
    %c0 = arith.constant 0 : index
    %c0_0 = arith.constant 0 : index
    %0 = vector.load %arg0[%c0, %c0_0] : memref<2x8xf32, #tpu.memory_space<vmem>>, vector<2x8xf32>
    %1 = math.exp %0 : vector<2x8xf32>
    %c0_1 = arith.constant 0 : index
    %c0_2 = arith.constant 0 : index
    %c0_3 = arith.constant 0 : index
    %2 = vector.load %arg1[%c0_1, %c0_2, %c0_3] : memref<2x2x8xf32, #tpu.memory_space<vmem>>, vector<1x2x8xf32>
    %3 = vector.shape_cast %2 : vector<1x2x8xf32> to vector<2x8xf32>
    %c1 = arith.constant 1 : index
    %c0_4 = arith.constant 0 : index
    %c0_5 = arith.constant 0 : index
    %4 = vector.load %arg1[%c1, %c0_4, %c0_5] : memref<2x2x8xf32, #tpu.memory_space<vmem>>, vector<1x2x8xf32>
    %5 = vector.shape_cast %4 : vector<1x2x8xf32> to vector<2x8xf32>
    %6 = vector.extract_strided_slice %1 {offsets = [0, 0], sizes = [1, 8], strides = [1, 1]} : vector<2x8xf32> to vector<1x8xf32>
    %7 = vector.broadcast %6 : vector<1x8xf32> to vector<2x8xf32>
    %8 = arith.mulf %7, %3 : vector<2x8xf32>
    %9 = vector.extract_strided_slice %1 {offsets = [1, 0], sizes = [1, 8], strides = [1, 1]} : vector<2x8xf32> to vector<1x8xf32>
    %10 = vector.broadcast %9 : vector<1x8xf32> to vector<2x8xf32>
    %11 = arith.mulf %10, %5 : vector<2x8xf32>
    %12 = arith.addf %8, %11 : vector<2x8xf32>
    %c0_6 = arith.constant 0 : index
    %c0_7 = arith.constant 0 : index
    %13 = vector.load %arg2[%c0_6, %c0_7] : memref<2x8xf32, #tpu.memory_space<vmem>>, vector<2x8xf32>
    tpu.vector_store %arg2[%c0_6, %c0_7], %12 {strides = array<i32>} : memref<2x8xf32, #tpu.memory_space<vmem>>, vector<2x8xf32>,
    return
  }
}

</mosaic_0001>

<llo_original>
// kernel: multi_pi_positive.1
$region0: #{multi_pi_positive.1}
  #allocation0 [shape = 'u32[]', space=smem, size = 0x4, offset = 0x4, fixed_abs, tag = 'smem constant byte address 0x4 - core index']
  #allocation1 [shape = 'u32[72,128]{1,0:T(1,128)}', space=vmem, size = 0x9000, scoped, tag = 'internal scratch']
  %s0 = inlined_call_operand.vmem [shape: f32[2,8], index: 0, kind: input, shape index: {}]
  %s1 = inlined_call_operand.vmem [shape: f32[2,2,8], index: 1, kind: input, shape index: {}]
  %s2 = inlined_call_operand.vmem [shape: f32[2,8], index: 2, kind: output, shape index: {}]
  %s3 = sld [smem:[#allocation0]]
  $region18: #{multi_pi_positive.1} parent=0
    _
  %s5 = ssub.s32 1, %s3
  %s6 = scalar_select 0, %s5, %s3
  // Predicated region
  $region2: #{multi_pi_positive.1} parent=0 // pred_check
    _
  $region3: #{multi_pi_positive.1} parent=0 // pred_check_branch
    %8 = sbr.rel (0) target = $region5
  $region4: #{multi_pi_positive.1} parent=0 // pred_region
    _
  $region5: #{multi_pi_positive.1} parent=0 // pred_fallthru
    _
  // Predicated region
  $region6: #{multi_pi_positive.1} parent=0 // pred_check
    _
  $region7: #{multi_pi_positive.1} parent=0 // pred_check_branch
    %10 = sbr.rel (0) target = $region9
  $region8: #{multi_pi_positive.1} parent=0 // pred_region
    _
  $region9: #{multi_pi_positive.1} parent=0 // pred_fallthru
    _
  %v11 = vld [vmem:[%s0] sm:$0x3]
  %v12 = vmul.f32 %v11, 1.442695
  %v13 = vpow.pop %v12
  %v14 = vld [vmem:[%s1] sm:$0x3]
  %s15 = scalar_lea.vmem %s1, 2
  %v16 = vld [vmem:[%s15] sm:$0x3]
  %v17 = vperm.slane %v13, 0
  %v18 = vmul.f32 %v17, %v14
  %v19 = vperm.slane %v13, 1
  %v20 = vmul.f32 %v19, %v16
  %v21 = vadd.f32 %v18, %v20
  %vm22 = vcmask 58368
  %23 = vst.msk [vmem:[%s2] sm:$0x3] %vm22, %v21
  // Predicated region
  $region10: #{multi_pi_positive.1} parent=0 // pred_check
    _
  $region11: #{multi_pi_positive.1} parent=0 // pred_check_branch
    %25 = sbr.rel (0) target = $region13
  $region12: #{multi_pi_positive.1} parent=0 // pred_region
    _
  $region13: #{multi_pi_positive.1} parent=0 // pred_fallthru
    _
  // Predicated region
  $region14: #{multi_pi_positive.1} parent=0 // pred_check
    _
  $region15: #{multi_pi_positive.1} parent=0 // pred_check_branch
    %27 = sbr.rel (0) target = $region17
  $region16: #{multi_pi_positive.1} parent=0 // pred_region
    _
  $region17: #{multi_pi_positive.1} parent=0 // pred_fallthru
    _

</llo_original>
